<compile_context>
chip_gen: v5e
topology: v5e:2x2
jax: 0.10.0
libtpu: 0.0.40
codegen_flags: <defaults>
</compile_context>

<pallas_src>
import functools

import jax
import jax.numpy as jnp
from jax import lax
from jax.experimental import pallas as pl
from jax.experimental.pallas import tpu as pltpu


def _round_up(n, m):
    return ((n + m - 1) // m) * m


# ----------------------------------------------------------------------------
# Single fused kernel: latent head + reparameterization + KL + assm/stereo scores
# ----------------------------------------------------------------------------
def _fused_vae_kernel(tree_ref, mol_ref, assm_ref, stereo_ref,
                      w_all_ref, b_all_ref, eps_t_ref, eps_m_ref, idx_ref,
                      z_tree_ref, z_mol_ref, kl_ref, scores_ref,
                      *, L2, LP, Na, Ns, NaP, NsP, r_mol, r_assm, r_stereo):
    f32 = jnp.float32
    B = tree_ref.shape[0]

    def pad_rows(x, target):
        n = x.shape[0]
        if n == target:
            return x
        return jnp.concatenate(
            [x, jnp.zeros((target - n, x.shape[1]), x.dtype)], axis=0)

    # ---- assemble one 8-sublane-aligned row slab in VMEM/registers ----
    # (tree at row 0, mol at r_mol, assm at r_assm, stereo at r_stereo; no HBM
    #  x_all materialization in the wrapper.)
    x_all = jnp.concatenate([
        pad_rows(tree_ref[...], r_mol),
        pad_rows(mol_ref[...], r_assm - r_mol),
        pad_rows(assm_ref[...], r_stereo - r_assm),
        pad_rows(stereo_ref[...], NsP),
    ], axis=0)

    # ---- MXU op #1: one matmul covers all four projections + both cand sets ----
    # w_all column groups are 128-lane aligned (padding columns are exactly zero
    # weight+bias), so we can keep the full LP width everywhere: no column
    # sub-slicing, and padded columns contribute exactly 0 to KL / z / scores.
    proj = jnp.dot(x_all, w_all_ref[...],
                   preferred_element_type=f32) + b_all_ref[...]

    tree_mean = proj[0:B, 0 * LP:1 * LP]                       # T_mean(tree_vec)
    tree_log_var = -jnp.abs(proj[0:B, 1 * LP:2 * LP])          # -|T_var(tree_vec)|
    mol_mean = proj[r_mol:r_mol + B, 2 * LP:3 * LP]            # G_mean(mol_vec)
    mol_log_var = -jnp.abs(proj[r_mol:r_mol + B, 3 * LP:4 * LP])
    cand_assm = proj[r_assm:r_assm + Na, 2 * LP:3 * LP]        # G_mean(assm cands)
    cand_stereo = proj[r_stereo:r_stereo + Ns, 2 * LP:3 * LP]  # G_mean(stereo cands)

    # ---- KL divergence (scalar straight to SMEM, no padded VMEM tile) ----
    kl_tree = 1.0 + tree_log_var - tree_mean * tree_mean - jnp.exp(tree_log_var)
    kl_mol = 1.0 + mol_log_var - mol_mean * mol_mean - jnp.exp(mol_log_var)
    kl_ref[0, 0] = -0.5 * (jnp.sum(kl_tree) + jnp.sum(kl_mol)) / B

    # ---- reparameterization trick (eps zero-padded to LP lanes in-kernel) ----
    if LP > L2:
        zpad = jnp.zeros((B, LP - L2), f32)
        eps_t = jnp.concatenate([eps_t_ref[...], zpad], axis=1)
        eps_m = jnp.concatenate([eps_m_ref[...], zpad], axis=1)
    else:
        eps_t = eps_t_ref[...]
        eps_m = eps_m_ref[...]
    z_tree = tree_mean + jnp.exp(tree_log_var * 0.5) * eps_t
    z_mol = mol_mean + jnp.exp(mol_log_var * 0.5) * eps_m
    z_tree_ref[...] = z_tree          # lane-dense (B, LP) unmasked store
    z_mol_ref[...] = z_mol

    # ---- MXU op #2: ONE fused one-hot gather matmul for z_mol[batch_idx] ----
    # (assm indices in rows [0,Na), stereo in [NaP,NaP+Ns); pad rows = -1 -> zero)
    Ni = idx_ref.shape[0]
    onehot = (idx_ref[...] ==
              lax.broadcasted_iota(jnp.int32, (Ni, B), 1)).astype(f32)
    sel = jnp.dot(onehot, z_mol, preferred_element_type=f32)   # (Ni, LP)
    sel_a = sel[0:Na]
    sel_s = sel[NaP:NaP + Ns]

    # ---- MXU op #3: ONE fused score contraction over stacked row products ----
    stacked = jnp.concatenate([
        pad_rows(cand_assm * sel_a, NaP),           # assm dots
        pad_rows(cand_stereo * sel_s, NsP),         # stereo dots
        pad_rows(cand_stereo * cand_stereo, NsP),   # ||cand||^2
        pad_rows(sel_s * sel_s, NsP),               # ||sel||^2
    ], axis=0)                                      # (NaP + 3*NsP, LP)

    ones_row = jnp.ones((1, LP), f32)
    dn = (((1,), (1,)), ((), ()))                   # contract last dims -> (1, N)
    row = lax.dot_general(ones_row, stacked, dn, preferred_element_type=f32)

    assm_sc = row[:, 0:Na]                               # <mol_sel, G_mean(cand)>
    dots = row[:, NaP:NaP + Ns]
    n1sq = row[:, NaP + NsP:NaP + NsP + Ns]
    n2sq = row[:, NaP + 2 * NsP:NaP + 2 * NsP + Ns]

    eps2 = jnp.float32(1e-16)                            # max(||x||, 1e-8)^2
    stereo_sc = dots * lax.rsqrt(jnp.maximum(n1sq, eps2) * jnp.maximum(n2sq, eps2))

    # ---- one lane-dense padded (1, SCORE_PAD) store: [assm | stereo | zeros] ----
    score_pad = scores_ref.shape[1]
    parts = [assm_sc, stereo_sc]
    rem = score_pad - Na - Ns
    if rem > 0:
        parts.append(jnp.zeros((1, rem), f32))
    scores_ref[...] = jnp.concatenate(parts, axis=1)


def fused_vae_head(packed, tree_vec, mol_vec, eps_t, eps_m,
                   assm_cand_raw, assm_batch_idx,
                   stereo_cand_raw, stereo_batch_idx):
    B, H = tree_vec.shape
    L2 = eps_t.shape[1]
    LP = packed["w_all"].shape[1] // 4
    Na = assm_cand_raw.shape[0]
    Ns = stereo_cand_raw.shape[0]
    NaP = _round_up(Na, 8)
    NsP = _round_up(Ns, 8)

    # 8-sublane-aligned row offsets of each group inside the in-kernel slab.
    r_mol = _round_up(B, 8)
    r_assm = r_mol + _round_up(B, 8)
    r_stereo = r_assm + NaP

    SCORE_PAD = _round_up(Na + Ns, 128)

    # Combined batch indices (assm rows first, stereo rows at an 8-aligned
    # offset); padding rows use -1 so their one-hot rows are all-zero.
    idx_all = jnp.concatenate([
        assm_batch_idx.astype(jnp.int32),
        jnp.full((NaP - Na,), -1, jnp.int32),
        stereo_batch_idx.astype(jnp.int32),
        jnp.full((NsP - Ns,), -1, jnp.int32),
    ]).reshape(NaP + NsP, 1)

    kernel = functools.partial(
        _fused_vae_kernel, L2=L2, LP=LP, Na=Na, Ns=Ns, NaP=NaP, NsP=NsP,
        r_mol=r_mol, r_assm=r_assm, r_stereo=r_stereo)

    vmem = pl.BlockSpec(memory_space=pltpu.MemorySpace.VMEM)
    smem = pl.BlockSpec(memory_space=pltpu.MemorySpace.SMEM)

    # NOTE: at production candidate counts this call should (a) cast MXU inputs
    # to bf16 on v6e/v7x and (b) grid over candidate-row tiles with a
    # candidate-constant weight BlockSpec + dimension_semantics=("parallel",),
    # sized for v7x's 64 MiB VMEM.  At these shapes a single invocation wins.
    z_tree_p, z_mol_p, kl, scores = pl.pallas_call(
        kernel,
        out_shape=(jax.ShapeDtypeStruct((B, LP), jnp.float32),       # z_tree (padded)
                   jax.ShapeDtypeStruct((B, LP), jnp.float32),       # z_mol  (padded)
                   jax.ShapeDtypeStruct((1, 1), jnp.float32),        # kl (SMEM)
                   jax.ShapeDtypeStruct((1, SCORE_PAD), jnp.float32)),  # scores
        in_specs=[vmem] * 9,
        out_specs=(vmem, vmem, smem, vmem),
    )(tree_vec, mol_vec, assm_cand_raw, stereo_cand_raw,
      packed["w_all"], packed["b_all"], eps_t, eps_m, idx_all)

    z_tree = z_tree_p[:, :L2]
    z_mol = z_mol_p[:, :L2]
    a_scores = scores[0, :Na]
    s_scores = scores[0, Na:Na + Ns]
    return z_tree, z_mol, kl[0, 0], a_scores, s_scores


# ----------------------------------------------------------------------------
# Plain-JAX glue: group-wise cross-entropy (size_average=False semantics) and
# accuracy — mirrors the per-node / per-molecule Python loops in JTNNVAE.assm /
# JTNNVAE.stereo, here over fixed synthetic equal-size groups.
# ----------------------------------------------------------------------------
def grouped_ce_and_acc(scores, group_size, labels):
    groups = scores.reshape(-1, group_size)                       # (G, k)
    lse = jax.nn.logsumexp(groups, axis=-1)                       # (G,)
    picked = jnp.take_along_axis(groups, labels[:, None], axis=-1)[:, 0]
    ce_sum = jnp.sum(lse - picked)                                # sum over groups
    acc = jnp.mean((picked >= jnp.max(groups, axis=-1)).astype(jnp.float32))
    return ce_sum, acc


# ----------------------------------------------------------------------------
# Forward pass (tensor part of JTNNVAE.forward)
# ----------------------------------------------------------------------------
def jtnnvae_forward(packed, tree_vec, mol_vec, eps_t, eps_m,
                    assm_cand_raw, assm_batch_idx, assm_labels,
                    stereo_cand_raw, stereo_batch_idx, stereo_labels,
                    *, assm_group, stereo_group, beta):
    batch_size = tree_vec.shape[0]

    z_tree, z_mol, kl_loss, a_scores, s_scores = fused_vae_head(
        packed, tree_vec, mol_vec, eps_t, eps_m,
        assm_cand_raw, assm_batch_idx, stereo_cand_raw, stereo_batch_idx)

    # ----- assm: grouped CE over candidate scores
    assm_ce_sum, assm_acc = grouped_ce_and_acc(a_scores, assm_group, assm_labels)
    assm_loss = assm_ce_sum / batch_size

    # ----- stereo: grouped CE over cosine-similarity scores
    n_stereo_groups = stereo_labels.shape[0]
    stereo_ce_sum, stereo_acc = grouped_ce_and_acc(s_scores, stereo_group,
                                                   stereo_labels)
    stereo_loss = stereo_ce_sum / n_stereo_groups

    # TODO(synk): word_loss / topo_loss come from JTNNDecoder, a data-dependent
    # tree-structured RNN over RDKit MolTrees — no clean Pallas equivalent.
    word_loss = jnp.float32(0.0)
    topo_loss = jnp.float32(0.0)
    word_acc = 0.0
    topo_acc = 0.0

    loss = word_loss + topo_loss + assm_loss + 2.0 * stereo_loss + beta * kl_loss
    return (loss, kl_loss, word_acc, topo_acc, assm_acc, stereo_acc,
            z_tree, z_mol, a_scores, s_scores)


# ----------------------------------------------------------------------------
# Parameter init (shapes from JTNNVAE.__init__) + one-time packing of the four
# projection weights into a single 128-lane-aligned column-group block.
# Packing is hoisted OUT of the per-call path (done once at setup).
# ----------------------------------------------------------------------------
def init_params(key, hidden_size, latent_size):
    L2 = latent_size // 2
    ks = jax.random.split(key, 8)
    s = 1.0 / jnp.sqrt(hidden_size)
    return {
        "wt_mean": jax.random.uniform(ks[0], (hidden_size, L2), jnp.float32, -s, s),
        "bt_mean": jax.random.uniform(ks[1], (1, L2), jnp.float32, -s, s),
        "wt_var":  jax.random.uniform(ks[2], (hidden_size, L2), jnp.float32, -s, s),
        "bt_var":  jax.random.uniform(ks[3], (1, L2), jnp.float32, -s, s),
        "wg_mean": jax.random.uniform(ks[4], (hidden_size, L2), jnp.float32, -s, s),
        "bg_mean": jax.random.uniform(ks[5], (1, L2), jnp.float32, -s, s),
        "wg_var":  jax.random.uniform(ks[6], (hidden_size, L2), jnp.float32, -s, s),
        "bg_var":  jax.random.uniform(ks[7], (1, L2), jnp.float32, -s, s),
    }


def pack_latent_params(params, hidden_size, latent_size):
    L2 = latent_size // 2
    LP = _round_up(L2, 128)
    w_all = jnp.zeros((hidden_size, 4 * LP), jnp.float32)
    b_all = jnp.zeros((1, 4 * LP), jnp.float32)
    names = [("wt_mean", "bt_mean"), ("wt_var", "bt_var"),
             ("wg_mean", "bg_mean"), ("wg_var", "bg_var")]
    for g, (nw, nb) in enumerate(names):
        w_all = w_all.at[:, g * LP:g * LP + L2].set(params[nw])
        b_all = b_all.at[:, g * LP:g * LP + L2].set(params[nb])
    return {"w_all": w_all, "b_all": b_all}


if __name__ == "__main__":
    hidden_size = 32
    latent_size = 32
    L2 = latent_size // 2
    B = 4                      # batch of molecules
    N_ASSM = 8                 # total assembly candidates (2 nodes x 4 cands)
    ASSM_GROUP = 4
    N_STEREO = 6               # total stereo candidates (2 molecules x 3 cands)
    STEREO_GROUP = 3

    key = jax.random.PRNGKey(0)
    k_par, k_tv, k_mv, k_et, k_em, k_ac, k_sc = jax.random.split(key, 7)

    params = init_params(k_par, hidden_size, latent_size)
    packed = pack_latent_params(params, hidden_size, latent_size)   # once, outside jit

    # TODO(synk): synthetic stand-ins for graph-encoder outputs (JTNNEncoder / MPN /
    # JTMPN) and the RDKit-derived candidate bookkeeping.
    tree_vec = jax.random.normal(k_tv, (B, hidden_size), jnp.float32)
    mol_vec = jax.random.normal(k_mv, (B, hidden_size), jnp.float32)
    eps_t = jax.random.normal(k_et, (B, L2), jnp.float32)
    eps_m = jax.random.normal(k_em, (B, L2), jnp.float32)

    assm_cand_raw = jax.random.normal(k_ac, (N_ASSM, hidden_size), jnp.float32)
    assm_batch_idx = jnp.array([0, 0, 0, 0, 1, 1, 1, 1], jnp.int32)
    assm_labels = jnp.array([1, 2], jnp.int32)          # one label per group

    stereo_cand_raw = jax.random.normal(k_sc, (N_STEREO, hidden_size), jnp.float32)
    stereo_batch_idx = jnp.array([2, 2, 2, 3, 3, 3], jnp.int32)
    stereo_labels = jnp.array([0, 2], jnp.int32)

    fwd = jax.jit(functools.partial(
        jtnnvae_forward,
        assm_group=ASSM_GROUP, stereo_group=STEREO_GROUP, beta=0.01))

    out = fwd(packed, tree_vec, mol_vec, eps_t, eps_m,
              assm_cand_raw, assm_batch_idx, assm_labels,
              stereo_cand_raw, stereo_batch_idx, stereo_labels)
    out = jax.block_until_ready(out)
    (loss, kl_loss, word_acc, topo_acc, assm_acc, stereo_acc,
     z_tree, z_mol, a_scores, s_scores) = out

    # ----- pure-JAX reference check of the fused Pallas kernel -----
    def ref_forward():
        tm = tree_vec @ params["wt_mean"] + params["bt_mean"]
        tlv = -jnp.abs(tree_vec @ params["wt_var"] + params["bt_var"])
        mm = mol_vec @ params["wg_mean"] + params["bg_mean"]
        mlv = -jnp.abs(mol_vec @ params["wg_var"] + params["bg_var"])
        zm = jnp.concatenate([tm, mm], axis=1)
        zlv = jnp.concatenate([tlv, mlv], axis=1)
        kl_ref = -0.5 * jnp.sum(1.0 + zlv - zm * zm - jnp.exp(zlv)) / B
        zt = tm + jnp.exp(tlv / 2) * eps_t
        zmol = mm + jnp.exp(mlv / 2) * eps_m
        # assm scores
        cand_a = assm_cand_raw @ params["wg_mean"] + params["bg_mean"]
        a_ref = jnp.sum(zmol[assm_batch_idx] * cand_a, axis=-1)
        # stereo cosine similarity
        cand_s = stereo_cand_raw @ params["wg_mean"] + params["bg_mean"]
        sel = zmol[stereo_batch_idx]
        dot = jnp.sum(cand_s * sel, axis=-1)
        n1 = jnp.sqrt(jnp.sum(cand_s * cand_s, axis=-1))
        n2 = jnp.sqrt(jnp.sum(sel * sel, axis=-1))
        s_ref = dot / (jnp.maximum(n1, 1e-8) * jnp.maximum(n2, 1e-8))
        return kl_ref, zt, zmol, a_ref, s_ref

    kl_ref, zt_ref, zm_ref, a_ref, s_ref = ref_forward()
    assert jnp.allclose(kl_loss, kl_ref, atol=1e-4, rtol=1e-4), (kl_loss, kl_ref)
    assert jnp.allclose(z_tree, zt_ref, atol=1e-4, rtol=1e-4)
    assert jnp.allclose(z_mol, zm_ref, atol=1e-4, rtol=1e-4)
    assert jnp.allclose(a_scores, a_ref, atol=1e-4, rtol=1e-4)
    assert jnp.allclose(s_scores, s_ref, atol=1e-4, rtol=1e-4)
    assert jnp.isfinite(loss)

    print("KERNEL_OK")
</pallas_src>

<mosaic_0001>
module attributes {stable_mosaic.version = 11 : i64} {
  func.func @_fused_vae_kernel(%arg0: memref<4x32xf32, #tpu.memory_space<vmem>>, %arg1: memref<4x32xf32, #tpu.memory_space<vmem>>, %arg2: memref<8x32xf32, #tpu.memory_space<vmem>>, %arg3: memref<6x32xf32, #tpu.memory_space<vmem>>, %arg4: memref<32x512xf32, #tpu.memory_space<vmem>>, %arg5: memref<1x512xf32, #tpu.memory_space<vmem>>, %arg6: memref<4x16xf32, #tpu.memory_space<vmem>>, %arg7: memref<4x16xf32, #tpu.memory_space<vmem>>, %arg8: memref<16x1xi32, #tpu.memory_space<vmem>>, %arg9: memref<4x128xf32, #tpu.memory_space<vmem>>, %arg10: memref<4x128xf32, #tpu.memory_space<vmem>>, %arg11: memref<1x1xf32, #tpu.memory_space<smem>>, %arg12: memref<1x128xf32, #tpu.memory_space<vmem>>) attributes {dimension_semantics = [], scalar_prefetch = 0 : i64, scratch_operands = 0 : i64, tpu.core_type = #tpu.core_type<tc>} {
    %c0 = arith.constant 0 : index
    %c0_0 = arith.constant 0 : index
    %0 = vector.load %arg0[%c0, %c0_0] : memref<4x32xf32, #tpu.memory_space<vmem>>, vector<4x32xf32>
    %cst = arith.constant 0.000000e+00 : f32
    %1 = vector.broadcast %cst : f32 to vector<4x32xf32>
    %2 = tpu.concatenate %0, %1 in 0 : vector<4x32xf32>, vector<4x32xf32> -> vector<8x32xf32>
    %c0_1 = arith.constant 0 : index
    %c0_2 = arith.constant 0 : index
    %3 = vector.load %arg1[%c0_1, %c0_2] : memref<4x32xf32, #tpu.memory_space<vmem>>, vector<4x32xf32>
    %cst_3 = arith.constant 0.000000e+00 : f32
    %4 = vector.broadcast %cst_3 : f32 to vector<4x32xf32>
    %5 = tpu.concatenate %3, %4 in 0 : vector<4x32xf32>, vector<4x32xf32> -> vector<8x32xf32>
    %c0_4 = arith.constant 0 : index
    %c0_5 = arith.constant 0 : index
    %6 = vector.load %arg2[%c0_4, %c0_5] : memref<8x32xf32, #tpu.memory_space<vmem>>, vector<8x32xf32>
    %c0_6 = arith.constant 0 : index
    %c0_7 = arith.constant 0 : index
    %7 = vector.load %arg3[%c0_6, %c0_7] : memref<6x32xf32, #tpu.memory_space<vmem>>, vector<6x32xf32>
    %cst_8 = arith.constant 0.000000e+00 : f32
    %8 = vector.broadcast %cst_8 : f32 to vector<2x32xf32>
    %9 = tpu.concatenate %7, %8 in 0 : vector<6x32xf32>, vector<2x32xf32> -> vector<8x32xf32>
    %10 = tpu.concatenate %2, %5, %6, %9 in 0 : vector<8x32xf32>, vector<8x32xf32>, vector<8x32xf32>, vector<8x32xf32> -> vector<32x32xf32>
    %c0_9 = arith.constant 0 : index
    %c0_10 = arith.constant 0 : index
    %11 = vector.load %arg4[%c0_9, %c0_10] : memref<32x512xf32, #tpu.memory_space<vmem>>, vector<32x512xf32>
    %cst_11 = arith.constant dense<0.000000e+00> : vector<32x512xf32>
    %12 = tpu.matmul %10, %11, %cst_11 {dimension_numbers = #tpu.dot_dimension_numbers<[1], [0], [0], [1], [0, 0, 1, 1], [], []>} : vector<32x32xf32>, vector<32x512xf32>, vector<32x512xf32> -> vector<32x512xf32>
    %c0_12 = arith.constant 0 : index
    %c0_13 = arith.constant 0 : index
    %13 = vector.load %arg5[%c0_12, %c0_13] : memref<1x512xf32, #tpu.memory_space<vmem>>, vector<1x512xf32>
    %14 = vector.broadcast %13 : vector<1x512xf32> to vector<32x512xf32>
    %15 = arith.addf %12, %14 : vector<32x512xf32>
    %16 = vector.extract_strided_slice %15 {offsets = [0, 0], sizes = [4, 128], strides = [1, 1]} : vector<32x512xf32> to vector<4x128xf32>
    %17 = vector.extract_strided_slice %15 {offsets = [0, 128], sizes = [4, 128], strides = [1, 1]} : vector<32x512xf32> to vector<4x128xf32>
    %18 = math.absf %17 : vector<4x128xf32>
    %cst_14 = arith.constant 0.000000e+00 : f32
    %19 = vector.broadcast %cst_14 : f32 to vector<4x128xf32>
    %20 = arith.subf %19, %18 : vector<4x128xf32>
    %21 = vector.extract_strided_slice %15 {offsets = [8, 256], sizes = [4, 128], strides = [1, 1]} : vector<32x512xf32> to vector<4x128xf32>
    %22 = vector.extract_strided_slice %15 {offsets = [8, 384], sizes = [4, 128], strides = [1, 1]} : vector<32x512xf32> to vector<4x128xf32>
    %23 = math.absf %22 : vector<4x128xf32>
    %cst_15 = arith.constant 0.000000e+00 : f32
    %24 = vector.broadcast %cst_15 : f32 to vector<4x128xf32>
    %25 = arith.subf %24, %23 : vector<4x128xf32>
    %26 = vector.extract_strided_slice %15 {offsets = [16, 256], sizes = [8, 128], strides = [1, 1]} : vector<32x512xf32> to vector<8x128xf32>
    %27 = vector.extract_strided_slice %15 {offsets = [24, 256], sizes = [6, 128], strides = [1, 1]} : vector<32x512xf32> to vector<6x128xf32>
    %cst_16 = arith.constant 1.000000e+00 : f32
    %28 = vector.broadcast %cst_16 : f32 to vector<4x128xf32>
    %29 = arith.addf %28, %20 : vector<4x128xf32>
    %30 = arith.mulf %16, %16 : vector<4x128xf32>
    %31 = arith.subf %29, %30 : vector<4x128xf32>
    %32 = math.exp %20 : vector<4x128xf32>
    %33 = arith.subf %31, %32 : vector<4x128xf32>
    %cst_17 = arith.constant 1.000000e+00 : f32
    %34 = vector.broadcast %cst_17 : f32 to vector<4x128xf32>
    %35 = arith.addf %34, %25 : vector<4x128xf32>
    %36 = arith.mulf %21, %21 : vector<4x128xf32>
    %37 = arith.subf %35, %36 : vector<4x128xf32>
    %38 = math.exp %25 : vector<4x128xf32>
    %39 = arith.subf %37, %38 : vector<4x128xf32>
    %40 = vector.shape_cast %33 : vector<4x128xf32> to vector<1x4x128xf32>
    %cst_18 = arith.constant dense<0.000000e+00> : vector<1xf32>
    %41 = vector.multi_reduction <add>, %40, %cst_18 [1, 2] : vector<1x4x128xf32> to vector<1xf32>
    %42 = vector.shape_cast %41 : vector<1xf32> to vector<1x1x1xf32>
    %43 = vector.extract %42[0, 0, 0] : f32 from vector<1x1x1xf32>
    %44 = vector.shape_cast %39 : vector<4x128xf32> to vector<1x4x128xf32>
    %cst_19 = arith.constant dense<0.000000e+00> : vector<1xf32>
    %45 = vector.multi_reduction <add>, %44, %cst_19 [1, 2] : vector<1x4x128xf32> to vector<1xf32>
    %46 = vector.shape_cast %45 : vector<1xf32> to vector<1x1x1xf32>
    %47 = vector.extract %46[0, 0, 0] : f32 from vector<1x1x1xf32>
    %48 = arith.addf %43, %47 : f32
    %cst_20 = arith.constant -5.000000e-01 : f32
    %49 = arith.mulf %cst_20, %48 : f32
    %cst_21 = arith.constant 4.000000e+00 : f32
    %50 = arith.divf %49, %cst_21 : f32
    %c0_22 = arith.constant 0 : index
    %c0_23 = arith.constant 0 : index
    %51 = memref.load %arg11[%c0_22, %c0_23] : memref<1x1xf32, #tpu.memory_space<smem>>
    memref.store %50, %arg11[%c0_22, %c0_23] : memref<1x1xf32, #tpu.memory_space<smem>>
    %cst_24 = arith.constant 0.000000e+00 : f32
    %52 = vector.broadcast %cst_24 : f32 to vector<4x112xf32>
    %c0_25 = arith.constant 0 : index
    %c0_26 = arith.constant 0 : index
    %53 = vector.load %arg6[%c0_25, %c0_26] : memref<4x16xf32, #tpu.memory_space<vmem>>, vector<4x16xf32>
    %54 = tpu.concatenate %53, %52 in 1 : vector<4x16xf32>, vector<4x112xf32> -> vector<4x128xf32>
    %c0_27 = arith.constant 0 : index
    %c0_28 = arith.constant 0 : index
    %55 = vector.load %arg7[%c0_27, %c0_28] : memref<4x16xf32, #tpu.memory_space<vmem>>, vector<4x16xf32>
    %56 = tpu.concatenate %55, %52 in 1 : vector<4x16xf32>, vector<4x112xf32> -> vector<4x128xf32>
    %cst_29 = arith.constant 5.000000e-01 : f32
    %57 = vector.broadcast %cst_29 : f32 to vector<4x128xf32>
    %58 = arith.mulf %20, %57 : vector<4x128xf32>
    %59 = math.exp %58 : vector<4x128xf32>
    %60 = arith.mulf %59, %54 : vector<4x128xf32>
    %61 = arith.addf %16, %60 : vector<4x128xf32>
    %cst_30 = arith.constant 5.000000e-01 : f32
    %62 = vector.broadcast %cst_30 : f32 to vector<4x128xf32>
    %63 = arith.mulf %25, %62 : vector<4x128xf32>
    %64 = math.exp %63 : vector<4x128xf32>
    %65 = arith.mulf %64, %56 : vector<4x128xf32>
    %66 = arith.addf %21, %65 : vector<4x128xf32>
    %c0_31 = arith.constant 0 : index
    %c0_32 = arith.constant 0 : index
    %67 = vector.load %arg9[%c0_31, %c0_32] : memref<4x128xf32, #tpu.memory_space<vmem>>, vector<4x128xf32>
    tpu.vector_store %arg9[%c0_31, %c0_32], %61 {strides = array<i32>} : memref<4x128xf32, #tpu.memory_space<vmem>>, vector<4x128xf32>,
    %c0_33 = arith.constant 0 : index
    %c0_34 = arith.constant 0 : index
    %68 = vector.load %arg10[%c0_33, %c0_34] : memref<4x128xf32, #tpu.memory_space<vmem>>, vector<4x128xf32>
    tpu.vector_store %arg10[%c0_33, %c0_34], %66 {strides = array<i32>} : memref<4x128xf32, #tpu.memory_space<vmem>>, vector<4x128xf32>,
    %c0_35 = arith.constant 0 : index
    %c0_36 = arith.constant 0 : index
    %69 = vector.load %arg8[%c0_35, %c0_36] : memref<16x1xi32, #tpu.memory_space<vmem>>, vector<16x1xi32>
    %70 = tpu.iota {dimensions = array<i32: 1>} : vector<16x4xi32>
    %71 = vector.broadcast %69 : vector<16x1xi32> to vector<16x4xi32>
    %72 = arith.cmpi eq, %71, %70 : vector<16x4xi32>
    %73 = arith.extui %72 : vector<16x4xi1> to vector<16x4xi32>
    %74 = arith.sitofp %73 : vector<16x4xi32> to vector<16x4xf32>
    %cst_37 = arith.constant dense<0.000000e+00> : vector<16x128xf32>
    %75 = tpu.matmul %74, %66, %cst_37 {dimension_numbers = #tpu.dot_dimension_numbers<[1], [0], [0], [1], [0, 0, 1, 1], [], []>} : vector<16x4xf32>, vector<4x128xf32>, vector<16x128xf32> -> vector<16x128xf32>
    %76 = vector.extract_strided_slice %75 {offsets = [0, 0], sizes = [8, 128], strides = [1, 1]} : vector<16x128xf32> to vector<8x128xf32>
    %77 = vector.extract_strided_slice %75 {offsets = [8, 0], sizes = [6, 128], strides = [1, 1]} : vector<16x128xf32> to vector<6x128xf32>
    %78 = arith.mulf %26, %76 : vector<8x128xf32>
    %79 = arith.mulf %27, %77 : vector<6x128xf32>
    %cst_38 = arith.constant 0.000000e+00 : f32
    %80 = vector.broadcast %cst_38 : f32 to vector<2x128xf32>
    %81 = tpu.concatenate %79, %80 in 0 : vector<6x128xf32>, vector<2x128xf32> -> vector<8x128xf32>
    %82 = arith.mulf %27, %27 : vector<6x128xf32>
    %cst_39 = arith.constant 0.000000e+00 : f32
    %83 = vector.broadcast %cst_39 : f32 to vector<2x128xf32>
    %84 = tpu.concatenate %82, %83 in 0 : vector<6x128xf32>, vector<2x128xf32> -> vector<8x128xf32>
    %85 = arith.mulf %77, %77 : vector<6x128xf32>
    %cst_40 = arith.constant 0.000000e+00 : f32
    %86 = vector.broadcast %cst_40 : f32 to vector<2x128xf32>
    %87 = tpu.concatenate %85, %86 in 0 : vector<6x128xf32>, vector<2x128xf32> -> vector<8x128xf32>
    %88 = tpu.concatenate %78, %81, %84, %87 in 0 : vector<8x128xf32>, vector<8x128xf32>, vector<8x128xf32>, vector<8x128xf32> -> vector<32x128xf32>
    %cst_41 = arith.constant 1.000000e+00 : f32
    %89 = vector.broadcast %cst_41 : f32 to vector<1x128xf32>
    %cst_42 = arith.constant dense<0.000000e+00> : vector<1x32xf32>
    %90 = tpu.matmul %89, %88, %cst_42 {dimension_numbers = #tpu.dot_dimension_numbers<[1], [1], [0], [0], [0, 0, 1, 0], [], []>} : vector<1x128xf32>, vector<32x128xf32>, vector<1x32xf32> -> vector<1x32xf32>
    %91 = vector.extract_strided_slice %90 {offsets = [0, 0], sizes = [1, 8], strides = [1, 1]} : vector<1x32xf32> to vector<1x8xf32>
    %92 = vector.extract_strided_slice %90 {offsets = [0, 8], sizes = [1, 6], strides = [1, 1]} : vector<1x32xf32> to vector<1x6xf32>
    %93 = vector.extract_strided_slice %90 {offsets = [0, 16], sizes = [1, 6], strides = [1, 1]} : vector<1x32xf32> to vector<1x6xf32>
    %94 = vector.extract_strided_slice %90 {offsets = [0, 24], sizes = [1, 6], strides = [1, 1]} : vector<1x32xf32> to vector<1x6xf32>
    %cst_43 = arith.constant 1.000000e-16 : f32
    %95 = vector.broadcast %cst_43 : f32 to vector<1x6xf32>
    %96 = arith.maximumf %93, %95 : vector<1x6xf32>
    %cst_44 = arith.constant 1.000000e-16 : f32
    %97 = vector.broadcast %cst_44 : f32 to vector<1x6xf32>
    %98 = arith.maximumf %94, %97 : vector<1x6xf32>
    %99 = arith.mulf %96, %98 : vector<1x6xf32>
    %100 = math.rsqrt %99 : vector<1x6xf32>
    %101 = arith.mulf %92, %100 : vector<1x6xf32>
    %cst_45 = arith.constant 0.000000e+00 : f32
    %102 = vector.broadcast %cst_45 : f32 to vector<1x114xf32>
    %103 = tpu.concatenate %91, %101, %102 in 1 : vector<1x8xf32>, vector<1x6xf32>, vector<1x114xf32> -> vector<1x128xf32>
    %c0_46 = arith.constant 0 : index
    %c0_47 = arith.constant 0 : index
    %104 = vector.load %arg12[%c0_46, %c0_47] : memref<1x128xf32, #tpu.memory_space<vmem>>, vector<1x128xf32>
    tpu.vector_store %arg12[%c0_46, %c0_47], %103 {strides = array<i32>} : memref<1x128xf32, #tpu.memory_space<vmem>>, vector<1x128xf32>,
    return
  }
}

</mosaic_0001>

<llo_original>
// kernel: squeeze.12
$region0: #{squeeze.12}
  %s0 = inlined_call_operand.vmem [shape: f32[6], index: 0, kind: input, shape index: {}]
  %s1 = inlined_call_operand.vmem [shape: f32[2,3], index: 1, kind: output, shape index: {}]
  $region1: #{squeeze.12} parent=0
    #allocation0 [shape = 'u8[4096]{0}', space=vmem, size = 0x1000, scoped, tag = 'scoped mem for output reshape']
    #allocation1 [shape = 'u8[4096]{0}', space=vmem, size = 0x1000, scoped, tag = 'scoped mem for input reshape']
    %s3 = ssub.s32 2, 1
    %v4 = vld [vmem:[%s0] sm:%s3]
    %5 = vst [vmem:[#allocation1] sm:%s3] %v4
    %v6 = vld [vmem:[#allocation1] sm:$0x1]
    %vm7 = vcmask 23552
    %8 = vst.msk [vmem:[#allocation0] sm:$0x1] %vm7, %v6
    %v9 = vld [vmem:[#allocation1] sm:$0x1]
    %10 = vrot.lane.b32.xlu0 %v9, 125
    %v11 = vpop.permute.xlu0 %10
    %vm12 = vcmask 23552
    %s13 = scalar_lea.vmem [#allocation0], 1
    %14 = vst.msk [vmem:[%s13] sm:$0x1] %vm12, %v11
    %s16 = ssub.s32 4, 1
    %v17 = vld [vmem:[#allocation0] sm:%s16]
    %s19 = ssub.s32 4, 1
    %20 = vst [vmem:[%s1] sm:%s19] %v17

// kernel: squeeze.10
$region0: #{squeeze.10}
  %s0 = inlined_call_operand.vmem [shape: f32[8], index: 0, kind: input, shape index: {}]
  %s1 = inlined_call_operand.vmem [shape: f32[2,4], index: 1, kind: output, shape index: {}]
  $region1: #{squeeze.10} parent=0
    #allocation0 [shape = 'u8[4096]{0}', space=vmem, size = 0x1000, scoped, tag = 'scoped mem for output reshape']
    #allocation1 [shape = 'u8[4096]{0}', space=vmem, size = 0x1000, scoped, tag = 'scoped mem for input reshape']
    %s3 = ssub.s32 2, 1
    %v4 = vld [vmem:[%s0] sm:%s3]
    %5 = vst [vmem:[#allocation1] sm:%s3] %v4
    %v6 = vld [vmem:[#allocation1] sm:$0x1]
    %vm7 = vcmask 31744
    %8 = vst.msk [vmem:[#allocation0] sm:$0x1] %vm7, %v6
    %v9 = vld [vmem:[#allocation1] sm:$0x1]
    %10 = vrot.lane.b32.xlu0 %v9, 124
    %v11 = vpop.permute.xlu0 %10
    %vm12 = vcmask 31744
    %s13 = scalar_lea.vmem [#allocation0], 1
    %14 = vst.msk [vmem:[%s13] sm:$0x1] %vm12, %v11
    %s16 = ssub.s32 4, 1
    %v17 = vld [vmem:[#allocation0] sm:%s16]
    %s19 = ssub.s32 4, 1
    %20 = vst [vmem:[%s1] sm:%s19] %v17

// kernel: jtnnvae_forward.1
$region0: #{jtnnvae_forward.1}
  #allocation0 [shape = 'u32[]', space=smem, size = 0x4, offset = 0x4, fixed_abs, tag = 'smem constant byte address 0x4 - core index']
  #allocation1 [shape = 'u32[72,128]{1,0:T(1,128)}', space=vmem, size = 0x9000, scoped, tag = 'internal scratch']
  %s0 = inlined_call_operand.vmem [shape: f32[4,32], index: 0, kind: input, shape index: {}]
  %s1 = inlined_call_operand.vmem [shape: f32[4,32], index: 1, kind: input, shape index: {}]
  %s2 = inlined_call_operand.vmem [shape: f32[8,32], index: 2, kind: input, shape index: {}]
  %s3 = inlined_call_operand.vmem [shape: f32[6,32], index: 3, kind: input, shape index: {}]
  %s4 = inlined_call_operand.hbm [shape: f32[32,512], index: 4, kind: input, shape index: {}]
  %s5 = inlined_call_operand.hbm [shape: f32[1,512], index: 5, kind: input, shape index: {}]
  %s6 = inlined_call_operand.hbm [shape: f32[4,16], index: 6, kind: input, shape index: {}]
  %s7 = inlined_call_operand.hbm [shape: f32[4,16], index: 7, kind: input, shape index: {}]
  %s8 = inlined_call_operand.vmem [shape: s32[16,1], index: 8, kind: input, shape index: {}]
  %s9 = inlined_call_operand.hbm [shape: f32[4,128], index: 9, kind: output, shape index: {0}]
  %s10 = inlined_call_operand.hbm [shape: f32[4,128], index: 10, kind: output, shape index: {1}]
  %s11 = inlined_call_operand.hbm [shape: f32[1,1], index: 11, kind: output, shape index: {2}]
  %s12 = inlined_call_operand.vmem [shape: f32[1,128], index: 12, kind: output, shape index: {3}]
  %13 = xla_tuple %s9, %s10, %s11, %s12
  %s14 = sld [smem:[#allocation0]]
  $region86: #{jtnnvae_forward.1} parent=0
    _
  %s16 = ssub.s32 1, %s14
  %s17 = scalar_select 0, %s16, %s14
  $region1: #{jtnnvae_forward.1} parent=0
    #allocation2 [shape = 'u8[65536]{0}', space=vmem, size = 0x10000, scoped, tag = 'input window, operand 4, single buffered']
    #allocation3 [shape = 's32[1]{0}', space=sflag, size = 0x4, scoped, tag = 'scoped memory for jtnnvae_forward.1']
    #allocation4 [shape = 's32[1]{0}', space=sflag, size = 0x4, scoped, tag = 'scoped memory for jtnnvae_forward.1']
    #allocation5 [shape = 's32[1]{0}', space=sflag, size = 0x4, scoped, tag = 'scoped memory for jtnnvae_forward.1']
    #allocation6 [shape = 'u8[2048]{0}', space=vmem, size = 0x800, scoped, tag = 'input window, operand 5, single buffered']
    #allocation7 [shape = 's32[1]{0}', space=sflag, size = 0x4, scoped, tag = 'scoped memory for jtnnvae_forward.1']
    #allocation8 [shape = 'u8[2048]{0}', space=vmem, size = 0x800, scoped, tag = 'input window, operand 6, single buffered']
    #allocation9 [shape = 'u8[2048]{0}', space=vmem, size = 0x800, scoped, tag = 'input window, operand 7, single buffered']
    #allocation10 [shape = 's32[1]{0}', space=sflag, size = 0x4, scoped, tag = 'scoped memory for jtnnvae_forward.1']
    #allocation11 [shape = 'u8[2048]{0}', space=vmem, size = 0x800, scoped, tag = 'output window, operand 0, single buffered']
    #allocation12 [shape = 'u8[2048]{0}', space=vmem, size = 0x800, scoped, tag = 'output window, operand 1, single buffered']
    #allocation13 [shape = 's32[1]{0}', space=sflag, size = 0x4, scoped, tag = 'scoped memory for jtnnvae_forward.1']
    #allocation14 [shape = 'u8[512]{0}', space=smem, size = 0x200, scoped, tag = 'output window, operand 2, single buffered']
    %18 = vsyncpa [#allocation3], 0
    %19 = vsyncpa [#allocation7], 0
    %20 = vsyncpa [#allocation10], 0
    %21 = vsyncpa [#allocation4], 0
    %22 = vsyncpa [#allocation13], 0
    %23 = vsyncpa [#allocation5], 0
    // Predicated region
    $region2: #{jtnnvae_forward.1} parent=1 // pred_check
      _
    $region3: #{jtnnvae_forward.1} parent=1 // pred_check_branch
      %25 = sbr.rel (0) target = $region5
    $region4: #{jtnnvae_forward.1} parent=1 // pred_region
      _
    $region5: #{jtnnvae_forward.1} parent=1 // pred_fallthru
      _
    // Predicated region
    $region6: #{jtnnvae_forward.1} parent=1 // pred_check
      _
    $region7: #{jtnnvae_forward.1} parent=1 // pred_check_branch
      %27 = sbr.rel (0) target = $region9
    $region8: #{jtnnvae_forward.1} parent=1 // pred_region
      _
    $region9: #{jtnnvae_forward.1} parent=1 // pred_fallthru
      _
    // Predicated region
    $region10: #{jtnnvae_forward.1} parent=1 // pred_check
      _
    $region11: #{jtnnvae_forward.1} parent=1 // pred_check_branch
      %29 = sbr.rel (0) target = $region13
    $region12: #{jtnnvae_forward.1} parent=1 // pred_region
      _
    $region13: #{jtnnvae_forward.1} parent=1 // pred_fallthru
      _
    // Predicated region
    $region14: #{jtnnvae_forward.1} parent=1 // pred_check
      _
    $region15: #{jtnnvae_forward.1} parent=1 // pred_check_branch
      %31 = sbr.rel (0) target = $region17
    $region16: #{jtnnvae_forward.1} parent=1 // pred_region
      _
    $region17: #{jtnnvae_forward.1} parent=1 // pred_fallthru
      _
    // Predicated region
    $region18: #{jtnnvae_forward.1} parent=1 // pred_check
      _
    $region19: #{jtnnvae_forward.1} parent=1 // pred_check_branch
      %33 = sbr.rel (0) target = $region21
    $region20: #{jtnnvae_forward.1} parent=1 // pred_region
      %35 = vsyncadd [#allocation3], 0
      %s36 = sshll.u32 %s4, 4
      %s37 = int_to_ptr.hbm [resolvable:$true] %s36
      %s38 = sshll.u32 [#allocation2], 4
      %s39 = int_to_ptr.vmem [resolvable:$true] %s38
      %44 = dma.hbm_to_vmem [thread:$0]  %s37, 2048, %s39, [#allocation3], 512, 512, 32
    $region21: #{jtnnvae_forward.1} parent=1 // pred_fallthru
      _
    // Predicated region
    $region22: #{jtnnvae_forward.1} parent=1 // pred_check
      _
    $region23: #{jtnnvae_forward.1} parent=1 // pred_check_branch
      %46 = sbr.rel (0) target = $region25
    $region24: #{jtnnvae_forward.1} parent=1 // pred_region
      %48 = vsyncadd [#allocation7], 0
      %s50 = sshll.u32 %s5, 4
      %s51 = int_to_ptr.hbm [resolvable:$true] %s50
      %s52 = sshll.u32 [#allocation6], 4
      %s53 = int_to_ptr.vmem [resolvable:$true] %s52
      %55 = dma.hbm_to_vmem [thread:$0]  %s51, 64, %s53, [#allocation7]
    $region25: #{jtnnvae_forward.1} parent=1 // pred_fallthru
      _
    // Predicated region
    $region26: #{jtnnvae_forward.1} parent=1 // pred_check
      _
    $region27: #{jtnnvae_forward.1} parent=1 // pred_check_branch
      %57 = sbr.rel (0) target = $region29
    $region28: #{jtnnvae_forward.1} parent=1 // pred_region
      %59 = vsyncadd [#allocation7], 0
      %s61 = sshll.u32 %s6, 4
      %s62 = int_to_ptr.hbm [resolvable:$true] %s61
      %s63 = sshll.u32 [#allocation8], 4
      %s64 = int_to_ptr.vmem [resolvable:$true] %s63
      %66 = dma.hbm_to_vmem [thread:$0]  %s62, 64, %s64, [#allocation7]
    $region29: #{jtnnvae_forward.1} parent=1 // pred_fallthru
      _
    // Predicated region
    $region30: #{jtnnvae_forward.1} parent=1 // pred_check
      _
    $region31: #{jtnnvae_forward.1} parent=1 // pred_check_branch
      %68 = sbr.rel (0) target = $region33
    $region32: #{jtnnvae_forward.1} parent=1 // pred_region
      %70 = vsyncadd [#allocation10], 0
      %s72 = sshll.u32 %s7, 4
      %s73 = int_to_ptr.hbm [resolvable:$true] %s72
      %s74 = sshll.u32 [#allocation9], 4
      %s75 = int_to_ptr.vmem [resolvable:$true] %s74
      %77 = dma.hbm_to_vmem [thread:$0]  %s73, 64, %s75, [#allocation10]
    $region33: #{jtnnvae_forward.1} parent=1 // pred_fallthru
      _
    // Predicated region
    $region34: #{jtnnvae_forward.1} parent=1 // pred_check
      _
    $region35: #{jtnnvae_forward.1} parent=1 // pred_check_branch
      %79 = sbr.rel (0) target = $region37
    $region36: #{jtnnvae_forward.1} parent=1 // pred_region
      _
    $region37: #{jtnnvae_forward.1} parent=1 // pred_fallthru
      _
    // Predicated region
    $region38: #{jtnnvae_forward.1} parent=1 // pred_check
      _
    $region39: #{jtnnvae_forward.1} parent=1 // pred_check_branch
      %81 = sbr.rel (0) target = $region41
    $region40: #{jtnnvae_forward.1} parent=1 // pred_region
      %83 = dma.done [#allocation3], 2048
    $region41: #{jtnnvae_forward.1} parent=1 // pred_fallthru
      _
    // Predicated region
    $region42: #{jtnnvae_forward.1} parent=1 // pred_check
      _
    $region43: #{jtnnvae_forward.1} parent=1 // pred_check_branch
      %85 = sbr.rel (0) target = $region45
    $region44: #{jtnnvae_forward.1} parent=1 // pred_region
      %87 = dma.done [#allocation7], 64
    $region45: #{jtnnvae_forward.1} parent=1 // pred_fallthru
      _
    // Predicated region
    $region46: #{jtnnvae_forward.1} parent=1 // pred_check
      _
    $region47: #{jtnnvae_forward.1} parent=1 // pred_check_branch
      %89 = sbr.rel (0) target = $region49
    $region48: #{jtnnvae_forward.1} parent=1 // pred_region
      %91 = dma.done [#allocation7], 64
    $region49: #{jtnnvae_forward.1} parent=1 // pred_fallthru
      _
    // Predicated region
    $region50: #{jtnnvae_forward.1} parent=1 // pred_check
      _
    $region51: #{jtnnvae_forward.1} parent=1 // pred_check_branch
      %93 = sbr.rel (0) target = $region53
    $region52: #{jtnnvae_forward.1} parent=1 // pred_region
      %95 = dma.done [#allocation10], 64
    $region53: #{jtnnvae_forward.1} parent=1 // pred_fallthru
      _
    %v96 = vld [vmem:[%s0] sm:$0xf]
    %vm97 = vcmask 1043456
    %v98 = vsel %vm97, %v96, 0.0
    %v99 = vld [vmem:[%s1] sm:$0xf]
    %v100 = vsel %vm97, %v99, 0.0
    %v101 = vld [vmem:[%s2] sm:$0xff]
    %v102 = vld [vmem:[%s3] sm:$0x3f]
    %vm103 = vcmask 1045504
    %v104 = vsel %vm103, %v102, 0.0
    %v105 = vld [vmem:[#allocation2] sm:$0xff]
    %v106 = vld [vmem:[#allocation2 + $0x8] sm:$0xff]
    %v107 = vld [vmem:[#allocation2 + $0x10] sm:$0xff]
    %v108 = vld [vmem:[#allocation2 + $0x18] sm:$0xff]
    %v109 = vld [vmem:[#allocation2 + $0x20] sm:$0xff]
    %v110 = vld [vmem:[#allocation2 + $0x28] sm:$0xff]
    %v111 = vld [vmem:[#allocation2 + $0x30] sm:$0xff]
    %v112 = vld [vmem:[#allocation2 + $0x38] sm:$0xff]
    %v113 = vld [vmem:[#allocation2 + $0x40] sm:$0xff]
    %v114 = vld [vmem:[#allocation2 + $0x48] sm:$0xff]
    %v115 = vld [vmem:[#allocation2 + $0x50] sm:$0xff]
    %v116 = vld [vmem:[#allocation2 + $0x58] sm:$0xff]
    %v117 = vld [vmem:[#allocation2 + $0x60] sm:$0xff]
    %v118 = vld [vmem:[#allocation2 + $0x68] sm:$0xff]
    %v119 = vld [vmem:[#allocation2 + $0x70] sm:$0xff]
    %v120 = vld [vmem:[#allocation2 + $0x78] sm:$0xff]
    %v121 = vld [vmem:[#allocation6] sm:$0xf]
    %v123 = vperm.slane %v121, 0
    %v124 = vperm.slane %v121, 1
    %v125 = vperm.slane %v121, 2
    %v126 = vperm.slane %v121, 3
    %vm131 = vcmask 261120
    %v133 = vsel %vm131, %v98, 0
    %v136 = vsel %vm131, %v100, 0
    %v139 = vsel %vm131, %v101, 0
    %v142 = vsel %vm131, %v104, 0
    %144 = vmatpush.msra.mxu0 0.0
    %145 = vmatpush.msra.mxu0 0.0
    %146 = vmatpush.msra.mxu0 0.0
    %147 = vmatpush.msra.mxu0 0.0
    %148 = vmatpush.msra.mxu0 0.0
    %149 = vmatpush.msra.mxu0 0.0
    %150 = vmatpush.msra.mxu0 0.0
    %151 = vmatpush.msra.mxu0 0.0
    %152 = vmatpush.msra.mxu0 0.0
    %153 = vmatpush.msra.mxu0 0.0
    %154 = vmatpush.msra.mxu0 0.0
    %155 = vmatpush.msra.mxu0 0.0
    %156 = vmatpush.msra.mxu0 %v117
    %157 = vmatpush.msra.mxu0 %v113
    %158 = vmatpush.msra.mxu0 %v109
    %159 = vmatpush.msra.mxu0 %v105
    %160 = vmatmul.f32.gmra.mxu0 %v133
    %v161 = vpop.f32.mrf.mxu0
    %v162 = vadd.f32 %v123, %v161
    %163 = vmatmul.f32.gmra.mxu0 %v136
    %v164 = vpop.f32.mrf.mxu0
    %165 = vmatmul.f32.gmra.mxu0 %v139
    %v166 = vpop.f32.mrf.mxu0
    %167 = vmatmul.f32.gmra.mxu0 %v142
    %v168 = vpop.f32.mrf.mxu0
    %169 = vdwg.mxu0
    %170 = vmatpush.msra.mxu0 0.0
    %171 = vmatpush.msra.mxu0 0.0
    %172 = vmatpush.msra.mxu0 0.0
    %173 = vmatpush.msra.mxu0 0.0
    %174 = vmatpush.msra.mxu0 0.0
    %175 = vmatpush.msra.mxu0 0.0
    %176 = vmatpush.msra.mxu0 0.0
    %177 = vmatpush.msra.mxu0 0.0
    %178 = vmatpush.msra.mxu0 0.0
    %179 = vmatpush.msra.mxu0 0.0
    %180 = vmatpush.msra.mxu0 0.0
    %181 = vmatpush.msra.mxu0 0.0
    %182 = vmatpush.msra.mxu0 %v118
    %183 = vmatpush.msra.mxu0 %v114
    %184 = vmatpush.msra.mxu0 %v110
    %185 = vmatpush.msra.mxu0 %v106
    %186 = vmatmul.f32.gmra.mxu0 %v133
    %v187 = vpop.f32.mrf.mxu0
    %v188 = vadd.f32 %v124, %v187
    %189 = vmatmul.f32.gmra.mxu0 %v136
    %v190 = vpop.f32.mrf.mxu0
    %191 = vmatmul.f32.gmra.mxu0 %v139
    %v192 = vpop.f32.mrf.mxu0
    %193 = vmatmul.f32.gmra.mxu0 %v142
    %v194 = vpop.f32.mrf.mxu0
    %195 = vdwg.mxu0
    %196 = vmatpush.msra.mxu0 0.0
    %197 = vmatpush.msra.mxu0 0.0
    %198 = vmatpush.msra.mxu0 0.0
    %199 = vmatpush.msra.mxu0 0.0
    %200 = vmatpush.msra.mxu0 0.0
    %201 = vmatpush.msra.mxu0 0.0
    %202 = vmatpush.msra.mxu0 0.0
    %203 = vmatpush.msra.mxu0 0.0
    %204 = vmatpush.msra.mxu0 0.0
    %205 = vmatpush.msra.mxu0 0.0
    %206 = vmatpush.msra.mxu0 0.0
    %207 = vmatpush.msra.mxu0 0.0
    %208 = vmatpush.msra.mxu0 %v119
    %209 = vmatpush.msra.mxu0 %v115
    %210 = vmatpush.msra.mxu0 %v111
    %211 = vmatpush.msra.mxu0 %v107
    %212 = vmatmul.f32.gmra.mxu0 %v133
    %v213 = vpop.f32.mrf.mxu0
    %214 = vmatmul.f32.gmra.mxu0 %v136
    %v215 = vpop.f32.mrf.mxu0
    %v216 = vadd.f32 %v125, %v215
    %217 = vmatmul.f32.gmra.mxu0 %v139
    %v218 = vpop.f32.mrf.mxu0
    %v219 = vadd.f32 %v125, %v218
    %220 = vmatmul.f32.gmra.mxu0 %v142
    %v221 = vpop.f32.mrf.mxu0
    %v222 = vadd.f32 %v125, %v221
    %223 = vdwg.mxu0
    %224 = vmatpush.msra.mxu0 0.0
    %225 = vmatpush.msra.mxu0 0.0
    %226 = vmatpush.msra.mxu0 0.0
    %227 = vmatpush.msra.mxu0 0.0
    %228 = vmatpush.msra.mxu0 0.0
    %229 = vmatpush.msra.mxu0 0.0
    %230 = vmatpush.msra.mxu0 0.0
    %231 = vmatpush.msra.mxu0 0.0
    %232 = vmatpush.msra.mxu0 0.0
    %233 = vmatpush.msra.mxu0 0.0
    %234 = vmatpush.msra.mxu0 0.0
    %235 = vmatpush.msra.mxu0 0.0
    %236 = vmatpush.msra.mxu0 %v120
    %237 = vmatpush.msra.mxu0 %v116
    %238 = vmatpush.msra.mxu0 %v112
    %239 = vmatpush.msra.mxu0 %v108
    %240 = vmatmul.f32.gmra.mxu0 %v133
    %v241 = vpop.f32.mrf.mxu0
    %242 = vmatmul.f32.gmra.mxu0 %v136
    %v243 = vpop.f32.mrf.mxu0
    %v244 = vadd.f32 %v126, %v243
    %245 = vmatmul.f32.gmra.mxu0 %v139
    %v246 = vpop.f32.mrf.mxu0
    %247 = vmatmul.f32.gmra.mxu0 %v142
    %v248 = vpop.f32.mrf.mxu0
    %249 = vdwg.mxu0
    %v250 = vand.u32 2147483647, %v188
    %v251 = vsub.f32 0.0, %v250
    %v252 = vand.u32 2147483647, %v244
    %v253 = vsub.f32 0.0, %v252
    %v254 = vadd.f32 %v251, 1.0
    %v255 = vmul.f32 %v162, %v162
    %v256 = vsub.f32 %v254, %v255
    %v257 = vmul.f32 %v251, 1.442695
    %v258 = vpow.pop %v257
    %v259 = vsub.f32 %v256, %v258
    %v260 = vadd.f32 %v253, 1.0
    %v261 = vmul.f32 %v216, %v216
    %v262 = vsub.f32 %v260, %v261
    %v263 = vmul.f32 %v253, 1.442695
    %v264 = vpow.pop %v263
    %v265 = vsub.f32 %v262, %v264
    %v266 = vsel %vm97, %v259, 0.0
    %267 = vadd.xlane.f32.xlu0 %v266
    %v268 = vpop.xlane.xlu0 %267
    %v269 = vrot.slane %v268, 4
    %v270 = vadd.f32 %v268, %v269
    %v271 = vrot.slane %v270, 2
    %v272 = vadd.f32 %v270, %v271
    %v273 = vrot.slane %v272, 1
    %v274 = vadd.f32 %v272, %v273
    %s275 = vtos %v274
    %v276 = vsel %vm97, %v265, 0.0
    %277 = vadd.xlane.f32.xlu0 %v276
    %v278 = vpop.xlane.xlu0 %277
    %v279 = vrot.slane %v278, 4
    %v280 = vadd.f32 %v278, %v279
    %v281 = vrot.slane %v280, 2
    %v282 = vadd.f32 %v280, %v281
    %v283 = vrot.slane %v282, 1
    %v284 = vadd.f32 %v282, %v283
    %s285 = vtos %v284
    %s286 = sadd.f32 %s275, %s285
    %s287 = smul.f32 %s286, -0.5
    %v288 = vrcp.pop 4.0
    %v289 = vmul.f32 4.0, %v288
    %v290 = vsub.f32 1.0, %v289
    %v291 = vmul.f32 %v288, %v290
    %v292 = vadd.f32 %v288, %v291
    %vm293 = vweird.f32 %v288
    %v294 = vsel %vm293, %v288, %v292
    %s295 = vtos %v294
    %s296 = smul.f32 %s287, %s295
    %s297 = scalar_lea.smem [#allocation14], 0
    %298 = sst [smem:[%s297]] %s296
    %v299 = vld [vmem:[#allocation8] sm:$0xf]
    %vm300 = vcmask 130048
    %v301 = vsel %vm300, %v299, 0.0
    %v302 = vld [vmem:[#allocation9] sm:$0xf]
    %v303 = vsel %vm300, %v302, 0.0
    %v304 = vmul.f32 %v251, 0.5
    %v305 = vmul.f32 %v304, 1.442695
    %v306 = vpow.pop %v305
    %v307 = vmul.f32 %v306, %v301
    %v308 = vadd.f32 %v162, %v307
    %v309 = vmul.f32 %v253, 0.5
    %v310 = vmul.f32 %v309, 1.442695
    %v311 = vpow.pop %v310
    %v312 = vmul.f32 %v311, %v303
    %v313 = vadd.f32 %v216, %v312
    %314 = vst [vmem:[#allocation11] sm:$0xf] %v308
    %315 = vst [vmem:[#allocation12] sm:$0xf] %v313
    %v316 = vld [vmem:[%s8] sm:$0xff]
    %v317 = vld [vmem:[%s8 + $0x8] sm:$0xff]
    %v318 = vlaneseq
    %v319 = vand.u32 %v318, 127
    %320 = vset.pattern.permute.xlu0 0
    %321 = vperm.xlu0 %320, %v316
    %v322 = vpop.permute.xlu0 %321
    %323 = vset.pattern.permute.xlu0 0
    %324 = vperm.xlu0 %323, %v317
    %v325 = vpop.permute.xlu0 %324
    %vm326 = vcmp.eq.s32.totalorder %v322, %v319
    %vm327 = vcmp.eq.s32.totalorder %v325, %v319
    %v328 = vsel %vm326, 1, 0
    %v329 = vsel %vm327, 1, 0
    %v330 = vcvt.s32.f32 %v328
    %v331 = vcvt.s32.f32 %v329
    %vm332 = vcmask 31744
    %v334 = vsel %vm332, %v330, 0
    %v337 = vsel %vm332, %v331, 0
    %v340 = vsel %vm97, %v313, 0
    %342 = vmatpush.msra.mxu0 0.0
    %343 = vmatpush.msra.mxu0 0.0
    %344 = vmatpush.msra.mxu0 0.0
    %345 = vmatpush.msra.mxu0 0.0
    %346 = vmatpush.msra.mxu0 0.0
    %347 = vmatpush.msra.mxu0 0.0
    %348 = vmatpush.msra.mxu0 0.0
    %349 = vmatpush.msra.mxu0 0.0
    %350 = vmatpush.msra.mxu0 0.0
    %351 = vmatpush.msra.mxu0 0.0
    %352 = vmatpush.msra.mxu0 0.0
    %353 = vmatpush.msra.mxu0 0.0
    %354 = vmatpush.msra.mxu0 0.0
    %355 = vmatpush.msra.mxu0 0.0
    %356 = vmatpush.msra.mxu0 0.0
    %357 = vmatpush.msra.mxu0 %v340
    %358 = vmatmul.f32.gmra.mxu0 %v334
    %v359 = vpop.f32.mrf.mxu0
    %v360 = vadd.f32 0.0, %v359
    %361 = vmatmul.f32.gmra.mxu0 %v337
    %v362 = vpop.f32.mrf.mxu0
    %v363 = vadd.f32 0.0, %v362
    %364 = vdwg.mxu0
    %v365 = vmul.f32 %v219, %v360
    %v366 = vmul.f32 %v222, %v363
    %v367 = vsel %vm103, %v366, 0.0
    %v368 = vmul.f32 %v222, %v222
    %v369 = vsel %vm103, %v368, 0.0
    %v370 = vmul.f32 %v363, %v363
    %v371 = vsel %vm103, %v370, 0.0
    %372 = vmatpush.xpose.msra.mxu0 0.0
    %373 = vmatpush.xpose.msra.mxu0 0.0
    %374 = vmatpush.xpose.msra.mxu0 0.0
    %375 = vmatpush.xpose.msra.mxu0 0.0
    %376 = vmatpush.xpose.msra.mxu0 0.0
    %377 = vmatpush.xpose.msra.mxu0 0.0
    %378 = vmatpush.xpose.msra.mxu0 0.0
    %379 = vmatpush.xpose.msra.mxu0 0.0
    %380 = vmatpush.xpose.msra.mxu0 0.0
    %381 = vmatpush.xpose.msra.mxu0 0.0
    %382 = vmatpush.xpose.msra.mxu0 0.0
    %383 = vmatpush.xpose.msra.mxu0 0.0
    %384 = vmatpush.xpose.msra.mxu0 %v371
    %385 = vmatpush.xpose.msra.mxu0 %v369
    %386 = vmatpush.xpose.msra.mxu0 %v367
    %387 = vmatpush.xpose.msra.mxu0 %v365
    %388 = vmatmul.f32.gmra.mxu0 1.0
    %v389 = vpop.f32.mrf.mxu0
    %v390 = vadd.f32 0.0, %v389
    %391 = vdwg.mxu0
    %v392 = vmax.f32 %v390, 1e-16
    %394 = vrot.lane.b32.xlu0 %v392, 120
    %v395 = vpop.permute.xlu0 %394
    %v397 = vmul.f32 %v392, %v395
    %v398 = vrsqrt.pop %v397
    %v399 = vmul.f32 %v398, %v397
    %v400 = vmul.f32 %v399, %v398
    %v401 = vmul.f32 0.5, %v400
    %v402 = vsub.f32 1.5, %v401
    %v403 = vmul.f32 %v398, %v402
    %vm404 = vweird.f32 %v397
    %vm405 = vweird.f32 %v398
    %vm406 = vmor %vm404, %vm405
    %v407 = vsel %vm406, %v398, %v403
    %409 = vrot.lane.b32.xlu0 %v407, 120
    %v410 = vpop.permute.xlu0 %409
    %v412 = vmul.f32 %v390, %v410
    %vm413 = vcmask 64512
    %v414 = vsel %vm413, %v390, %v412
    %vm415 = vcmask 113664
    %v416 = vsel %vm415, %v414, 0.0
    %417 = vst [vmem:[%s12] sm:$0x1] %v416
    // Predicated region
    $region54: #{jtnnvae_forward.1} parent=1 // pred_check
      _
    $region55: #{jtnnvae_forward.1} parent=1 // pred_check_branch
      %419 = sbr.rel (0) target = $region57
    $region56: #{jtnnvae_forward.1} parent=1 // pred_region
      %421 = vsyncadd [#allocation4], 0
      %s423 = sshll.u32 [#allocation11], 4
      %s424 = int_to_ptr.vmem [resolvable:$true] %s423
      %s425 = sshll.u32 %s9, 4
      %s426 = int_to_ptr.hbm [resolvable:$true] %s425
      %428 = dma.vmem_to_hbm [thread:$0]  %s424, 64, %s426, [#allocation4]
    $region57: #{jtnnvae_forward.1} parent=1 // pred_fallthru
      _
    // Predicated region
    $region58: #{jtnnvae_forward.1} parent=1 // pred_check
      _
    $region59: #{jtnnvae_forward.1} parent=1 // pred_check_branch
      %430 = sbr.rel (0) target = $region61
    $region60: #{jtnnvae_forward.1} parent=1 // pred_region
      %432 = vsyncadd [#allocation13], 0
      %s434 = sshll.u32 [#allocation12], 4
      %s435 = int_to_ptr.vmem [resolvable:$true] %s434
      %s436 = sshll.u32 %s10, 4
      %s437 = int_to_ptr.hbm [resolvable:$true] %s436
      %439 = dma.vmem_to_hbm [thread:$0]  %s435, 64, %s437, [#allocation13]
    $region61: #{jtnnvae_forward.1} parent=1 // pred_fallthru
      _
    // Predicated region
    $region62: #{jtnnvae_forward.1} parent=1 // pred_check
      _
    $region63: #{jtnnvae_forward.1} parent=1 // pred_check_branch
      %441 = sbr.rel (0) target = $region65
    $region64: #{jtnnvae_forward.1} parent=1 // pred_region
      %443 = vsyncadd [#allocation5], 0
      %s445 = sshll.u32 %s11, 4
      %s446 = int_to_ptr.hbm [resolvable:$true] %s445
      %448 = dma.smem_to_hbm [#allocation14], 16, %s446, [#allocation5]
    $region65: #{jtnnvae_forward.1} parent=1 // pred_fallthru
      _
    // Predicated region
    $region66: #{jtnnvae_forward.1} parent=1 // pred_check
      _
    $region67: #{jtnnvae_forward.1} parent=1 // pred_check_branch
      %450 = sbr.rel (0) target = $region69
    $region68: #{jtnnvae_forward.1} parent=1 // pred_region
      _
    $region69: #{jtnnvae_forward.1} parent=1 // pred_fallthru
      _
    // Predicated region
    $region70: #{jtnnvae_forward.1} parent=1 // pred_check
      _
    $region71: #{jtnnvae_forward.1} parent=1 // pred_check_branch
      %452 = sbr.rel (0) target = $region73
    $region72: #{jtnnvae_forward.1} parent=1 // pred_region
      %454 = dma.done [#allocation4], 64
    $region73: #{jtnnvae_forward.1} parent=1 // pred_fallthru
      _
    // Predicated region
    $region74: #{jtnnvae_forward.1} parent=1 // pred_check
      _
    $region75: #{jtnnvae_forward.1} parent=1 // pred_check_branch
      %456 = sbr.rel (0) target = $region77
    $region76: #{jtnnvae_forward.1} parent=1 // pred_region
      %458 = dma.done [#allocation13], 64
    $region77: #{jtnnvae_forward.1} parent=1 // pred_fallthru
      _
    // Predicated region
    $region78: #{jtnnvae_forward.1} parent=1 // pred_check
      _
    $region79: #{jtnnvae_forward.1} parent=1 // pred_check_branch
      %460 = sbr.rel (0) target = $region81
    $region80: #{jtnnvae_forward.1} parent=1 // pred_region
      %462 = dma.done [#allocation5], 16
    $region81: #{jtnnvae_forward.1} parent=1 // pred_fallthru
      _
    // Predicated region
    $region82: #{jtnnvae_forward.1} parent=1 // pred_check
      _
    $region83: #{jtnnvae_forward.1} parent=1 // pred_check_branch
      %464 = sbr.rel (0) target = $region85
    $region84: #{jtnnvae_forward.1} parent=1 // pred_region
      _
    $region85: #{jtnnvae_forward.1} parent=1 // pred_fallthru
      _
    %465 = sfence
    %466 = vsyncpa [#allocation3], 1
    %467 = vsyncpa [#allocation7], 1
    %468 = vsyncpa [#allocation10], 1
    %469 = vsyncpa [#allocation4], 1
    %470 = vsyncpa [#allocation13], 1
    %471 = vsyncpa [#allocation5], 1

</llo_original>
